<compile_context>
chip_gen: v6e
topology: v6e:2x2x1
jax: 0.10.0
libtpu: 0.0.40
codegen_flags: <defaults>
</compile_context>

<pallas_src>
import functools

import jax
import jax.numpy as jnp
from jax.experimental import pallas as pl
from jax.experimental.pallas import tpu as pltpu

NEG_INF = -1000000.0


def _mha_kernel(*refs, num_heads, head_size, scale, compute_dtype, use_mask):
    # Block views (Bt batch elements per grid step, all heads per step):
    #   q_ref   : (Bt, n_q, emb)
    #   k_ref   : (Bt, n_k, emb)
    #   v_ref   : (Bt, n_k, emb)
    #   m_ref   : (Bt, 1, n_k)   (only in the masked specialization; 1 = drop)
    #   out_ref : (Bt, n_q, emb)   lane-dense output slab
    #   att_ref : (Bt, H, n_q, n_k)
    if use_mask:
        q_ref, k_ref, v_ref, m_ref, out_ref, att_ref = refs
    else:
        q_ref, k_ref, v_ref, out_ref, att_ref = refs
        m_ref = None

    # Cast MXU inputs once (bf16 by default, f32 accumulation below).
    q = q_ref[...].astype(compute_dtype)
    k = k_ref[...].astype(compute_dtype)
    v = v_ref[...].astype(compute_dtype)

    if use_mask:
        masked = m_ref[...] > 0.0            # (Bt, 1, n_k), broadcasts over n_q

    direct_store = (head_size % 128 == 0)    # aligned, unmasked lane stores
    per_head_out = []

    for h in range(num_heads):               # static unroll; heads = lane slices
        lo = h * head_size
        hi = lo + head_size
        qh = q[:, :, lo:hi]                  # (Bt, n_q, hs)
        kh = k[:, :, lo:hi]                  # (Bt, n_k, hs)
        vh = v[:, :, lo:hi]                  # (Bt, n_k, hs)

        # Batched QK^T on the MXU (batch dim = Bt), f32 accumulation.
        s = jnp.einsum("bqd,bkd->bqk", qh, kh,
                       preferred_element_type=jnp.float32)   # (Bt, n_q, n_k)
        s = s * scale                        # scale applied on f32 scores
        if use_mask:
            s = jnp.where(masked, NEG_INF, s)

        # Numerically stable softmax along keys, all in f32.
        m_row = jnp.max(s, axis=-1, keepdims=True)
        e = jnp.exp(s - m_row)
        denom = jnp.sum(e, axis=-1, keepdims=True)
        p = e * pl.reciprocal(denom, approx=False)   # EUP, exact: rows sum to 1

        att_ref[:, h, :, :] = p.astype(att_ref.dtype)

        oh = jnp.einsum("bqk,bkd->bqd", p.astype(compute_dtype), vh,
                        preferred_element_type=jnp.float32)  # (Bt, n_q, hs)
        if direct_store:
            out_ref[:, :, lo:hi] = oh.astype(out_ref.dtype)  # frees live range now
        else:
            per_head_out.append(oh)

    if not direct_store:
        # Sub-128 head sizes: one concat + one store beats H masked sub-slices.
        out_ref[...] = jnp.concatenate(per_head_out, axis=-1).astype(out_ref.dtype)


def _vmem_budget_bytes():
    """Per-chip VMEM limit: ~75% of physical, capped at 100 MiB.

    v7x (64 MiB physical) -> 48 MiB; v5e/v6e (128 MiB) -> 96 MiB.
    """
    try:
        phys = pltpu.get_tpu_info().vmem_capacity_bytes
    except Exception:
        phys = 64 * 1024 * 1024   # conservative fallback (v7x per-TC VMEM)
    return min(int(phys * 0.75), 100 * 1024 * 1024)


def _choose_block_batch(B, n_q, n_k, emb, num_heads, use_mask, budget_bytes):
    """Largest divisor Bt of B whose double-buffered blocks fit the budget,
    preferring Bt <= B/2 so the grid has >= 2 steps (v7x core parallelism)."""
    def step_bytes(bt):
        in_b = bt * (n_q + 2 * n_k) * emb * 4          # q, k, v (f32 in HBM)
        out_b = bt * n_q * emb * 4                     # output slab
        att_b = bt * num_heads * n_q * n_k * 4         # attention matrix
        m_b = bt * n_k * 4 if use_mask else 0          # key mask
        return 2 * (in_b + out_b + att_b + m_b)        # double buffering

    divisors = [d for d in range(1, B + 1) if B % d == 0]
    fitting = [d for d in divisors if step_bytes(d) <= budget_bytes]
    if not fitting:
        return 1
    preferred = [d for d in fitting if B // d >= 2]    # keep grid length >= 2
    return max(preferred) if preferred else max(fitting)


def multi_head_attention(query, key, value, n_q, n_k, num_heads, key_mask=None,
                         compute_dtype=jnp.bfloat16):
    """Pallas implementation of MultiHeadAttention.forward.

    query : (B, n_q, embedding_size)
    key   : (B, n_k, embedding_size)
    value : (B, n_k, embedding_size)
    key_mask : optional (B, n_k), 1.0 = masked out, 0.0 = keep
    compute_dtype : dtype fed to the MXU (bf16 default; f32 for exact math).

    Returns (value_attention (B, n_q, embedding_size),
             att             (B, num_heads, n_q, n_k))
    """
    B, _, emb = query.shape
    head_size = emb // num_heads
    embedding_size = head_size * num_heads
    assert embedding_size == emb, "embedding_size must be divisible by num_heads"
    scale = 1.0 / float(embedding_size) ** 0.5
    use_mask = key_mask is not None

    vmem_limit = _vmem_budget_bytes()
    bt = _choose_block_batch(B, n_q, n_k, emb, num_heads, use_mask,
                             budget_bytes=int(0.8 * vmem_limit))
    grid = (B // bt,)

    kernel = functools.partial(_mha_kernel, num_heads=num_heads,
                               head_size=head_size, scale=scale,
                               compute_dtype=compute_dtype, use_mask=use_mask)

    in_specs = [
        pl.BlockSpec((bt, n_q, embedding_size), lambda b: (b, 0, 0)),
        pl.BlockSpec((bt, n_k, embedding_size), lambda b: (b, 0, 0)),
        pl.BlockSpec((bt, n_k, embedding_size), lambda b: (b, 0, 0)),
    ]
    args = [query, key, value]
    if use_mask:
        # f32 mask kept for robust lowering at tiny n_k; at production shapes
        # an int8 mask would quarter this (already tiny) DMA.
        in_specs.append(pl.BlockSpec((bt, 1, n_k), lambda b: (b, 0, 0)))
        args.append(key_mask.reshape(B, 1, n_k).astype(jnp.float32))

    out, att = pl.pallas_call(
        kernel,
        out_shape=(
            jax.ShapeDtypeStruct((B, n_q, embedding_size), jnp.float32),
            jax.ShapeDtypeStruct((B, num_heads, n_q, n_k), jnp.float32),
        ),
        grid_spec=pltpu.PrefetchScalarGridSpec(
            num_scalar_prefetch=0,
            grid=grid,                       # Bt batch elements per step
            in_specs=in_specs,
            out_specs=[
                pl.BlockSpec((bt, n_q, embedding_size), lambda b: (b, 0, 0)),
                pl.BlockSpec((bt, num_heads, n_q, n_k), lambda b: (b, 0, 0, 0)),
            ],
        ),
        compiler_params=pltpu.CompilerParams(
            dimension_semantics=("parallel",),   # shards grid across TCs (v7x)
            vmem_limit_bytes=vmem_limit,
        ),
    )(*args)

    # Output already (B, n_q, emb) and att already (B, H, n_q, n_k): no glue.
    return out, att


def _reference(query, key, value, n_q, n_k, num_heads, key_mask=None):
    """Pure-JAX replica of the PyTorch forward, for verification."""
    B, _, emb_in = query.shape
    head_size = emb_in // num_heads
    embedding_size = head_size * num_heads
    q = query.reshape(B, n_q, num_heads, head_size).transpose(0, 2, 1, 3)
    k = key.reshape(B, n_k, num_heads, head_size).transpose(0, 2, 1, 3)
    v = value.reshape(B, n_k, num_heads, head_size).transpose(0, 2, 1, 3)
    qk = jnp.einsum("bhqd,bhkd->bhqk", q, k)
    if key_mask is None:
        qk = qk / embedding_size ** 0.5
    else:
        km = key_mask.reshape(B, 1, 1, n_k)
        qk = (1 - km) * qk / embedding_size ** 0.5 + km * NEG_INF
    att = jax.nn.softmax(qk, axis=3)
    out = jnp.einsum("bhqk,bhkd->bhqd", att, v)
    out = out.transpose(0, 2, 1, 3).reshape(B, n_q, embedding_size)
    return out, att


if __name__ == "__main__":
    B, n_q, n_k, num_heads, emb = 2, 8, 8, 4, 32

    key0 = jax.random.PRNGKey(0)
    kq, kk, kv, km = jax.random.split(key0, 4)
    query = jax.random.normal(kq, (B, n_q, emb), dtype=jnp.float32)
    key_t = jax.random.normal(kk, (B, n_k, emb), dtype=jnp.float32)
    value = jax.random.normal(kv, (B, n_k, emb), dtype=jnp.float32)
    # key_mask: 1.0 masks out a key; deterministic pattern
    key_mask = (jax.random.uniform(km, (B, n_k)) > 0.7).astype(jnp.float32)

    ref_out, ref_att = _reference(query, key_t, value, n_q, n_k, num_heads)
    ref_out_m, ref_att_m = _reference(query, key_t, value, n_q, n_k, num_heads,
                                      key_mask=key_mask)

    # Exact-math path (f32 MXU inputs): tight tolerance.
    out, att = multi_head_attention(query, key_t, value, n_q, n_k, num_heads,
                                    compute_dtype=jnp.float32)
    out_m, att_m = multi_head_attention(query, key_t, value, n_q, n_k, num_heads,
                                        key_mask=key_mask,
                                        compute_dtype=jnp.float32)
    jax.block_until_ready((out, att, out_m, att_m))
    TOL_F32 = dict(atol=1e-4, rtol=1e-4)
    assert jnp.allclose(out, ref_out, **TOL_F32)
    assert jnp.allclose(att, ref_att, **TOL_F32)
    assert jnp.allclose(out_m, ref_out_m, **TOL_F32)
    assert jnp.allclose(att_m, ref_att_m, **TOL_F32)

    # Default perf path (bf16 MXU inputs, f32 accumulation): bf16-level tolerance.
    out_b, att_b = multi_head_attention(query, key_t, value, n_q, n_k, num_heads)
    out_bm, att_bm = multi_head_attention(query, key_t, value, n_q, n_k, num_heads,
                                          key_mask=key_mask)
    jax.block_until_ready((out_b, att_b, out_bm, att_bm))
    TOL_BF16 = dict(atol=5e-2, rtol=5e-2)
    assert jnp.allclose(out_b, ref_out, **TOL_BF16)
    assert jnp.allclose(att_b, ref_att, **TOL_BF16)
    assert jnp.allclose(out_bm, ref_out_m, **TOL_BF16)
    assert jnp.allclose(att_bm, ref_att_m, **TOL_BF16)

    print("KERNEL_OK")
</pallas_src>

<mosaic_0001>
module attributes {stable_mosaic.version = 11 : i64} {
  func.func @_mha_kernel(%arg0: i32, %arg1: memref<1x8x32xf32, #tpu.memory_space<vmem>>, %arg2: memref<1x8x32xf32, #tpu.memory_space<vmem>>, %arg3: memref<1x8x32xf32, #tpu.memory_space<vmem>>, %arg4: memref<1x8x32xf32, #tpu.memory_space<vmem>>, %arg5: memref<1x4x8x8xf32, #tpu.memory_space<vmem>>) attributes {dimension_semantics = [#tpu.dimension_semantics<parallel>], iteration_bounds = array<i64: 2>, scalar_prefetch = 0 : i64, scratch_operands = 0 : i64, tpu.core_type = #tpu.core_type<tc>, window_params = [{transform_indices = @transform_0, window_bounds = array<i64: 1, 8, 32>}, {transform_indices = @transform_1, window_bounds = array<i64: 1, 8, 32>}, {transform_indices = @transform_2, window_bounds = array<i64: 1, 8, 32>}, {transform_indices = @transform_3, window_bounds = array<i64: 1, 8, 32>}, {transform_indices = @transform_4, window_bounds = array<i64: 1, 4, 8, 8>}]} {
    %c0 = arith.constant 0 : index
    %c0_0 = arith.constant 0 : index
    %c0_1 = arith.constant 0 : index
    %0 = vector.load %arg1[%c0, %c0_0, %c0_1] : memref<1x8x32xf32, #tpu.memory_space<vmem>>, vector<1x8x32xf32>
    %c0_2 = arith.constant 0 : index
    %c0_3 = arith.constant 0 : index
    %c0_4 = arith.constant 0 : index
    %1 = vector.load %arg2[%c0_2, %c0_3, %c0_4] : memref<1x8x32xf32, #tpu.memory_space<vmem>>, vector<1x8x32xf32>
    %c0_5 = arith.constant 0 : index
    %c0_6 = arith.constant 0 : index
    %c0_7 = arith.constant 0 : index
    %2 = vector.load %arg3[%c0_5, %c0_6, %c0_7] : memref<1x8x32xf32, #tpu.memory_space<vmem>>, vector<1x8x32xf32>
    %3 = vector.extract_strided_slice %0 {offsets = [0, 0, 0], sizes = [1, 8, 8], strides = [1, 1, 1]} : vector<1x8x32xf32> to vector<1x8x8xf32>
    %4 = vector.extract_strided_slice %1 {offsets = [0, 0, 0], sizes = [1, 8, 8], strides = [1, 1, 1]} : vector<1x8x32xf32> to vector<1x8x8xf32>
    %5 = vector.extract_strided_slice %2 {offsets = [0, 0, 0], sizes = [1, 8, 8], strides = [1, 1, 1]} : vector<1x8x32xf32> to vector<1x8x8xf32>
    "tpu.trace_start"() <{level = 10 : i32, message = "bqd,bkd->bqk"}> : () -> ()
    %cst = arith.constant dense<0.000000e+00> : vector<1x8x8xf32>
    %6 = tpu.matmul %3, %4, %cst {dimension_numbers = #tpu.dot_dimension_numbers<[2], [2], [1], [1], [0, 0, 0, 1, 1, 1], [0], [0]>} : vector<1x8x8xf32>, vector<1x8x8xf32>, vector<1x8x8xf32> -> vector<1x8x8xf32>
    "tpu.trace_stop"() : () -> ()
    %cst_8 = arith.constant 0.176776692 : f32
    %7 = vector.broadcast %cst_8 : f32 to vector<1x8x8xf32>
    %8 = arith.mulf %6, %7 : vector<1x8x8xf32>
    %cst_9 = arith.constant dense<0xFF800000> : vector<1x8xf32>
    %9 = vector.multi_reduction <maximumf>, %8, %cst_9 [2] : vector<1x8x8xf32> to vector<1x8xf32>
    %10 = vector.shape_cast %9 : vector<1x8xf32> to vector<1x8x1xf32>
    %11 = vector.broadcast %10 : vector<1x8x1xf32> to vector<1x8x8xf32>
    %12 = arith.subf %8, %11 : vector<1x8x8xf32>
    %13 = math.exp %12 : vector<1x8x8xf32>
    %cst_10 = arith.constant dense<0.000000e+00> : vector<1x8xf32>
    %14 = vector.multi_reduction <add>, %13, %cst_10 [2] : vector<1x8x8xf32> to vector<1x8xf32>
    %15 = vector.shape_cast %14 : vector<1x8xf32> to vector<1x8x1xf32>
    %16 = tpu.reciprocal %15 : vector<1x8x1xf32> -> vector<1x8x1xf32>
    %17 = vector.broadcast %16 : vector<1x8x1xf32> to vector<1x8x8xf32>
    %18 = arith.mulf %13, %17 : vector<1x8x8xf32>
    %c0_11 = arith.constant 0 : index
    %c0_12 = arith.constant 0 : index
    %c0_13 = arith.constant 0 : index
    %c0_14 = arith.constant 0 : index
    %19 = vector.load %arg5[%c0_11, %c0_12, %c0_13, %c0_14] : memref<1x4x8x8xf32, #tpu.memory_space<vmem>>, vector<1x1x8x8xf32>
    %20 = vector.shape_cast %19 : vector<1x1x8x8xf32> to vector<1x8x8xf32>
    %21 = vector.shape_cast %18 : vector<1x8x8xf32> to vector<1x1x8x8xf32>
    tpu.vector_store %arg5[%c0_11, %c0_12, %c0_13, %c0_14], %21 {strides = array<i32>} : memref<1x4x8x8xf32, #tpu.memory_space<vmem>>, vector<1x1x8x8xf32>,
    "tpu.trace_start"() <{level = 10 : i32, message = "bqk,bkd->bqd"}> : () -> ()
    %cst_15 = arith.constant dense<0.000000e+00> : vector<1x8x8xf32>
    %22 = tpu.matmul %18, %5, %cst_15 {dimension_numbers = #tpu.dot_dimension_numbers<[2], [1], [1], [2], [0, 0, 0, 1, 1, 2], [0], [0]>} : vector<1x8x8xf32>, vector<1x8x8xf32>, vector<1x8x8xf32> -> vector<1x8x8xf32>
    "tpu.trace_stop"() : () -> ()
    %23 = vector.extract_strided_slice %0 {offsets = [0, 0, 8], sizes = [1, 8, 8], strides = [1, 1, 1]} : vector<1x8x32xf32> to vector<1x8x8xf32>
    %24 = vector.extract_strided_slice %1 {offsets = [0, 0, 8], sizes = [1, 8, 8], strides = [1, 1, 1]} : vector<1x8x32xf32> to vector<1x8x8xf32>
    %25 = vector.extract_strided_slice %2 {offsets = [0, 0, 8], sizes = [1, 8, 8], strides = [1, 1, 1]} : vector<1x8x32xf32> to vector<1x8x8xf32>
    "tpu.trace_start"() <{level = 10 : i32, message = "bqd,bkd->bqk"}> : () -> ()
    %cst_16 = arith.constant dense<0.000000e+00> : vector<1x8x8xf32>
    %26 = tpu.matmul %23, %24, %cst_16 {dimension_numbers = #tpu.dot_dimension_numbers<[2], [2], [1], [1], [0, 0, 0, 1, 1, 1], [0], [0]>} : vector<1x8x8xf32>, vector<1x8x8xf32>, vector<1x8x8xf32> -> vector<1x8x8xf32>
    "tpu.trace_stop"() : () -> ()
    %cst_17 = arith.constant 0.176776692 : f32
    %27 = vector.broadcast %cst_17 : f32 to vector<1x8x8xf32>
    %28 = arith.mulf %26, %27 : vector<1x8x8xf32>
    %cst_18 = arith.constant dense<0xFF800000> : vector<1x8xf32>
    %29 = vector.multi_reduction <maximumf>, %28, %cst_18 [2] : vector<1x8x8xf32> to vector<1x8xf32>
    %30 = vector.shape_cast %29 : vector<1x8xf32> to vector<1x8x1xf32>
    %31 = vector.broadcast %30 : vector<1x8x1xf32> to vector<1x8x8xf32>
    %32 = arith.subf %28, %31 : vector<1x8x8xf32>
    %33 = math.exp %32 : vector<1x8x8xf32>
    %cst_19 = arith.constant dense<0.000000e+00> : vector<1x8xf32>
    %34 = vector.multi_reduction <add>, %33, %cst_19 [2] : vector<1x8x8xf32> to vector<1x8xf32>
    %35 = vector.shape_cast %34 : vector<1x8xf32> to vector<1x8x1xf32>
    %36 = tpu.reciprocal %35 : vector<1x8x1xf32> -> vector<1x8x1xf32>
    %37 = vector.broadcast %36 : vector<1x8x1xf32> to vector<1x8x8xf32>
    %38 = arith.mulf %33, %37 : vector<1x8x8xf32>
    %c0_20 = arith.constant 0 : index
    %c1 = arith.constant 1 : index
    %c0_21 = arith.constant 0 : index
    %c0_22 = arith.constant 0 : index
    %39 = vector.load %arg5[%c0_20, %c1, %c0_21, %c0_22] : memref<1x4x8x8xf32, #tpu.memory_space<vmem>>, vector<1x1x8x8xf32>
    %40 = vector.shape_cast %39 : vector<1x1x8x8xf32> to vector<1x8x8xf32>
    %41 = vector.shape_cast %38 : vector<1x8x8xf32> to vector<1x1x8x8xf32>
    tpu.vector_store %arg5[%c0_20, %c1, %c0_21, %c0_22], %41 {strides = array<i32>} : memref<1x4x8x8xf32, #tpu.memory_space<vmem>>, vector<1x1x8x8xf32>,
    "tpu.trace_start"() <{level = 10 : i32, message = "bqk,bkd->bqd"}> : () -> ()
    %cst_23 = arith.constant dense<0.000000e+00> : vector<1x8x8xf32>
    %42 = tpu.matmul %38, %25, %cst_23 {dimension_numbers = #tpu.dot_dimension_numbers<[2], [1], [1], [2], [0, 0, 0, 1, 1, 2], [0], [0]>} : vector<1x8x8xf32>, vector<1x8x8xf32>, vector<1x8x8xf32> -> vector<1x8x8xf32>
    "tpu.trace_stop"() : () -> ()
    %43 = vector.extract_strided_slice %0 {offsets = [0, 0, 16], sizes = [1, 8, 8], strides = [1, 1, 1]} : vector<1x8x32xf32> to vector<1x8x8xf32>
    %44 = vector.extract_strided_slice %1 {offsets = [0, 0, 16], sizes = [1, 8, 8], strides = [1, 1, 1]} : vector<1x8x32xf32> to vector<1x8x8xf32>
    %45 = vector.extract_strided_slice %2 {offsets = [0, 0, 16], sizes = [1, 8, 8], strides = [1, 1, 1]} : vector<1x8x32xf32> to vector<1x8x8xf32>
    "tpu.trace_start"() <{level = 10 : i32, message = "bqd,bkd->bqk"}> : () -> ()
    %cst_24 = arith.constant dense<0.000000e+00> : vector<1x8x8xf32>
    %46 = tpu.matmul %43, %44, %cst_24 {dimension_numbers = #tpu.dot_dimension_numbers<[2], [2], [1], [1], [0, 0, 0, 1, 1, 1], [0], [0]>} : vector<1x8x8xf32>, vector<1x8x8xf32>, vector<1x8x8xf32> -> vector<1x8x8xf32>
    "tpu.trace_stop"() : () -> ()
    %cst_25 = arith.constant 0.176776692 : f32
    %47 = vector.broadcast %cst_25 : f32 to vector<1x8x8xf32>
    %48 = arith.mulf %46, %47 : vector<1x8x8xf32>
    %cst_26 = arith.constant dense<0xFF800000> : vector<1x8xf32>
    %49 = vector.multi_reduction <maximumf>, %48, %cst_26 [2] : vector<1x8x8xf32> to vector<1x8xf32>
    %50 = vector.shape_cast %49 : vector<1x8xf32> to vector<1x8x1xf32>
    %51 = vector.broadcast %50 : vector<1x8x1xf32> to vector<1x8x8xf32>
    %52 = arith.subf %48, %51 : vector<1x8x8xf32>
    %53 = math.exp %52 : vector<1x8x8xf32>
    %cst_27 = arith.constant dense<0.000000e+00> : vector<1x8xf32>
    %54 = vector.multi_reduction <add>, %53, %cst_27 [2] : vector<1x8x8xf32> to vector<1x8xf32>
    %55 = vector.shape_cast %54 : vector<1x8xf32> to vector<1x8x1xf32>
    %56 = tpu.reciprocal %55 : vector<1x8x1xf32> -> vector<1x8x1xf32>
    %57 = vector.broadcast %56 : vector<1x8x1xf32> to vector<1x8x8xf32>
    %58 = arith.mulf %53, %57 : vector<1x8x8xf32>
    %c0_28 = arith.constant 0 : index
    %c2 = arith.constant 2 : index
    %c0_29 = arith.constant 0 : index
    %c0_30 = arith.constant 0 : index
    %59 = vector.load %arg5[%c0_28, %c2, %c0_29, %c0_30] : memref<1x4x8x8xf32, #tpu.memory_space<vmem>>, vector<1x1x8x8xf32>
    %60 = vector.shape_cast %59 : vector<1x1x8x8xf32> to vector<1x8x8xf32>
    %61 = vector.shape_cast %58 : vector<1x8x8xf32> to vector<1x1x8x8xf32>
    tpu.vector_store %arg5[%c0_28, %c2, %c0_29, %c0_30], %61 {strides = array<i32>} : memref<1x4x8x8xf32, #tpu.memory_space<vmem>>, vector<1x1x8x8xf32>,
    "tpu.trace_start"() <{level = 10 : i32, message = "bqk,bkd->bqd"}> : () -> ()
    %cst_31 = arith.constant dense<0.000000e+00> : vector<1x8x8xf32>
    %62 = tpu.matmul %58, %45, %cst_31 {dimension_numbers = #tpu.dot_dimension_numbers<[2], [1], [1], [2], [0, 0, 0, 1, 1, 2], [0], [0]>} : vector<1x8x8xf32>, vector<1x8x8xf32>, vector<1x8x8xf32> -> vector<1x8x8xf32>
    "tpu.trace_stop"() : () -> ()
    %63 = vector.extract_strided_slice %0 {offsets = [0, 0, 24], sizes = [1, 8, 8], strides = [1, 1, 1]} : vector<1x8x32xf32> to vector<1x8x8xf32>
    %64 = vector.extract_strided_slice %1 {offsets = [0, 0, 24], sizes = [1, 8, 8], strides = [1, 1, 1]} : vector<1x8x32xf32> to vector<1x8x8xf32>
    %65 = vector.extract_strided_slice %2 {offsets = [0, 0, 24], sizes = [1, 8, 8], strides = [1, 1, 1]} : vector<1x8x32xf32> to vector<1x8x8xf32>
    "tpu.trace_start"() <{level = 10 : i32, message = "bqd,bkd->bqk"}> : () -> ()
    %cst_32 = arith.constant dense<0.000000e+00> : vector<1x8x8xf32>
    %66 = tpu.matmul %63, %64, %cst_32 {dimension_numbers = #tpu.dot_dimension_numbers<[2], [2], [1], [1], [0, 0, 0, 1, 1, 1], [0], [0]>} : vector<1x8x8xf32>, vector<1x8x8xf32>, vector<1x8x8xf32> -> vector<1x8x8xf32>
    "tpu.trace_stop"() : () -> ()
    %cst_33 = arith.constant 0.176776692 : f32
    %67 = vector.broadcast %cst_33 : f32 to vector<1x8x8xf32>
    %68 = arith.mulf %66, %67 : vector<1x8x8xf32>
    %cst_34 = arith.constant dense<0xFF800000> : vector<1x8xf32>
    %69 = vector.multi_reduction <maximumf>, %68, %cst_34 [2] : vector<1x8x8xf32> to vector<1x8xf32>
    %70 = vector.shape_cast %69 : vector<1x8xf32> to vector<1x8x1xf32>
    %71 = vector.broadcast %70 : vector<1x8x1xf32> to vector<1x8x8xf32>
    %72 = arith.subf %68, %71 : vector<1x8x8xf32>
    %73 = math.exp %72 : vector<1x8x8xf32>
    %cst_35 = arith.constant dense<0.000000e+00> : vector<1x8xf32>
    %74 = vector.multi_reduction <add>, %73, %cst_35 [2] : vector<1x8x8xf32> to vector<1x8xf32>
    %75 = vector.shape_cast %74 : vector<1x8xf32> to vector<1x8x1xf32>
    %76 = tpu.reciprocal %75 : vector<1x8x1xf32> -> vector<1x8x1xf32>
    %77 = vector.broadcast %76 : vector<1x8x1xf32> to vector<1x8x8xf32>
    %78 = arith.mulf %73, %77 : vector<1x8x8xf32>
    %c0_36 = arith.constant 0 : index
    %c3 = arith.constant 3 : index
    %c0_37 = arith.constant 0 : index
    %c0_38 = arith.constant 0 : index
    %79 = vector.load %arg5[%c0_36, %c3, %c0_37, %c0_38] : memref<1x4x8x8xf32, #tpu.memory_space<vmem>>, vector<1x1x8x8xf32>
    %80 = vector.shape_cast %79 : vector<1x1x8x8xf32> to vector<1x8x8xf32>
    %81 = vector.shape_cast %78 : vector<1x8x8xf32> to vector<1x1x8x8xf32>
    tpu.vector_store %arg5[%c0_36, %c3, %c0_37, %c0_38], %81 {strides = array<i32>} : memref<1x4x8x8xf32, #tpu.memory_space<vmem>>, vector<1x1x8x8xf32>,
    "tpu.trace_start"() <{level = 10 : i32, message = "bqk,bkd->bqd"}> : () -> ()
    %cst_39 = arith.constant dense<0.000000e+00> : vector<1x8x8xf32>
    %82 = tpu.matmul %78, %65, %cst_39 {dimension_numbers = #tpu.dot_dimension_numbers<[2], [1], [1], [2], [0, 0, 0, 1, 1, 2], [0], [0]>} : vector<1x8x8xf32>, vector<1x8x8xf32>, vector<1x8x8xf32> -> vector<1x8x8xf32>
    "tpu.trace_stop"() : () -> ()
    %83 = tpu.concatenate %22, %42, %62, %82 in 2 : vector<1x8x8xf32>, vector<1x8x8xf32>, vector<1x8x8xf32>, vector<1x8x8xf32> -> vector<1x8x32xf32>
    %c0_40 = arith.constant 0 : index
    %c0_41 = arith.constant 0 : index
    %c0_42 = arith.constant 0 : index
    %84 = vector.load %arg4[%c0_40, %c0_41, %c0_42] : memref<1x8x32xf32, #tpu.memory_space<vmem>>, vector<1x8x32xf32>
    tpu.vector_store %arg4[%c0_40, %c0_41, %c0_42], %83 {strides = array<i32>} : memref<1x8x32xf32, #tpu.memory_space<vmem>>, vector<1x8x32xf32>,
    return
  }
  func.func @transform_0(%arg0: i32) -> (i32, i32, i32) {
    %c0_i32 = arith.constant 0 : i32
    %c0_i32_0 = arith.constant 0 : i32
    %c0_i32_1 = arith.constant 0 : i32
    return %arg0, %c0_i32, %c0_i32_0 : i32, i32, i32
  }
  func.func @transform_1(%arg0: i32) -> (i32, i32, i32) {
    %c0_i32 = arith.constant 0 : i32
    %c0_i32_0 = arith.constant 0 : i32
    %c0_i32_1 = arith.constant 0 : i32
    return %arg0, %c0_i32, %c0_i32_0 : i32, i32, i32
  }
  func.func @transform_2(%arg0: i32) -> (i32, i32, i32) {
    %c0_i32 = arith.constant 0 : i32
    %c0_i32_0 = arith.constant 0 : i32
    %c0_i32_1 = arith.constant 0 : i32
    return %arg0, %c0_i32, %c0_i32_0 : i32, i32, i32
  }
  func.func @transform_3(%arg0: i32) -> (i32, i32, i32) {
    %c0_i32 = arith.constant 0 : i32
    %c0_i32_0 = arith.constant 0 : i32
    %c0_i32_1 = arith.constant 0 : i32
    return %arg0, %c0_i32, %c0_i32_0 : i32, i32, i32
  }
  func.func @transform_4(%arg0: i32) -> (i32, i32, i32, i32) {
    %c0_i32 = arith.constant 0 : i32
    %c0_i32_0 = arith.constant 0 : i32
    %c0_i32_1 = arith.constant 0 : i32
    %c0_i32_2 = arith.constant 0 : i32
    return %arg0, %c0_i32, %c0_i32_0, %c0_i32_1 : i32, i32, i32, i32
  }
}

</mosaic_0001>

<llo_original>
// kernel: tpu_custom_call.1
$region0: #{tpu_custom_call.1}
  #allocation0 [shape = 'u32[]', space=smem, size = 0x4, offset = 0x4, fixed_abs, tag = 'smem constant byte address 0x4 - core index']
  #allocation1 [shape = 'u32[144,128]{1,0:T(1,128)}', space=vmem, size = 0x12000, scoped, tag = 'internal scratch']
  %s0 = inlined_call_operand.hbm [shape: f32[2,8,32], index: 0, kind: input, shape index: {}]
  %s1 = inlined_call_operand.hbm [shape: f32[2,8,32], index: 1, kind: input, shape index: {}]
  %s2 = inlined_call_operand.hbm [shape: f32[2,8,32], index: 2, kind: input, shape index: {}]
  %s3 = inlined_call_operand.hbm [shape: f32[2,8,32], index: 3, kind: output, shape index: {0}]
  %s4 = inlined_call_operand.hbm [shape: f32[2,4,8,8], index: 4, kind: output, shape index: {1}]
  %5 = xla_tuple %s3, %s4
  %s6 = sld [smem:[#allocation0]]
  $region65: #{tpu_custom_call.1} parent=0
    _
  %s8 = ssub.s32 1, %s6
  %s9 = scalar_select 0, %s8, %s6
  $region1: #{tpu_custom_call.1} parent=0
    #allocation2 [shape = 'u8[8192]{0}', space=vmem, size = 0x2000, scoped, tag = 'input window, operand 0']
    #allocation3 [shape = 's32[2]{0}', space=sflag, size = 0x8, scoped, tag = 'scoped memory for tpu_custom_call.1']
    #allocation4 [shape = 's32[2]{0}', space=sflag, size = 0x8, scoped, tag = 'scoped memory for tpu_custom_call.1']
    #allocation5 [shape = 'u8[8192]{0}', space=vmem, size = 0x2000, scoped, tag = 'input window, operand 1']
    #allocation6 [shape = 's32[2]{0}', space=sflag, size = 0x8, scoped, tag = 'scoped memory for tpu_custom_call.1']
    #allocation7 [shape = 'u8[8192]{0}', space=vmem, size = 0x2000, scoped, tag = 'input window, operand 2']
    #allocation8 [shape = 'u8[8192]{0}', space=vmem, size = 0x2000, scoped, tag = 'output window, operand 0']
    #allocation9 [shape = 'u8[32768]{0}', space=vmem, size = 0x8000, scoped, tag = 'output window, operand 1']
    #allocation10 [shape = 's32[2]{0}', space=sflag, size = 0x8, scoped, tag = 'scoped memory for tpu_custom_call.1']
    %10 = vsyncpa [#allocation3], 0
    %s11 = scalar_lea.sflag [#allocation3], 1
    %12 = vsyncpa %s11, 0
    %13 = vsyncpa [#allocation6], 0
    %s14 = scalar_lea.sflag [#allocation6], 1
    %15 = vsyncpa %s14, 0
    %16 = vsyncpa [#allocation4], 0
    %s17 = scalar_lea.sflag [#allocation4], 1
    %18 = vsyncpa %s17, 0
    %19 = vsyncpa [#allocation10], 0
    %s20 = scalar_lea.sflag [#allocation10], 1
    %21 = vsyncpa %s20, 0
    loop: start=0, step=1, limit=4
    $region2: #{tpu_custom_call.1} parent=1 // loop_pre_header
      _
    $region3: #{tpu_custom_call.1} parent=1 // loop_header
      %s23 = sphi 0, %s27
      %p24 = scmp.ge.s32.totalorder %s23, 4
      %s33 = sphi 0, %s35
      %s36 = sphi 0, %s33
      %s37 = sphi 0, %s36
      %s53 = sphi 0, %s37
      %s59 = sphi 0, %s61
      %s62 = sphi 0, %s59
      %s63 = sphi 0, %s62
      %s79 = sphi 0, %s63
      %s85 = sphi 0, %s87
      %s88 = sphi 0, %s85
      %s89 = sphi 0, %s88
      %s105 = sphi 0, %s89
      %s111 = sphi 0, %s113
      %s114 = sphi 0, %s111
      %s115 = sphi 0, %s114
      %s131 = sphi 0, %s115
      %s137 = sphi 0, %s139
      %s140 = sphi 0, %s137
      %s141 = sphi 0, %s140
      %s157 = sphi 0, %s141
    $region4: #{tpu_custom_call.1} parent=1 // loop_header_branch
      %26 = sbr.rel (%p24) target = $region8
    $region5: #{tpu_custom_call.1} parent=1 // loop_body
      %s28 = ssub.s32 %s23, 1
      %s29 = ssub.s32 %s23, 2
      %s30 = sadd.s32 %s23, 1
      %s31 = ssub.s32 %s23, %s30
      %p32 = scmp.eq.s32.totalorder %s31, 0
      %s34 = sadd.s32 %s33, 1
      %s35 = scalar_select %p32, %s33, %s34
      %p38 = pneg %p32
      %p39 = scmp.eq.s32.totalorder %s23, 1
      %p40 = por %p38, %p39
      %p41 = scmp.ne.s32.totalorder %s33, %s36
      %p42 = scmp.eq.s32.totalorder %s23, 0
      %p43 = por %p41, %p42
      %p44 = scmp.ne.s32.totalorder %s33, %s36
      %p45 = scmp.eq.s32.totalorder %s28, 1
      %p46 = por %p44, %p45
      %p47 = scmp.ne.s32.totalorder %s36, %s37
      %p48 = scmp.eq.s32.totalorder %s28, 0
      %p49 = por %p47, %p48
      %p50 = scmp.ne.s32.totalorder %s36, %s37
      %p51 = scmp.eq.s32.totalorder %s29, 1
      %p52 = por %p50, %p51
      %p54 = scmp.ne.s32.totalorder %s37, %s53
      %p55 = scmp.eq.s32.totalorder %s29, 0
      %p56 = por %p54, %p55
      %s57 = ssub.s32 %s23, %s30
      %p58 = scmp.eq.s32.totalorder %s57, 0
      %s60 = sadd.s32 %s59, 1
      %s61 = scalar_select %p58, %s59, %s60
      %p64 = pneg %p58
      %p65 = scmp.eq.s32.totalorder %s23, 1
      %p66 = por %p64, %p65
      %p67 = scmp.ne.s32.totalorder %s59, %s62
      %p68 = scmp.eq.s32.totalorder %s23, 0
      %p69 = por %p67, %p68
      %p70 = scmp.ne.s32.totalorder %s59, %s62
      %p71 = scmp.eq.s32.totalorder %s28, 1
      %p72 = por %p70, %p71
      %p73 = scmp.ne.s32.totalorder %s62, %s63
      %p74 = scmp.eq.s32.totalorder %s28, 0
      %p75 = por %p73, %p74
      %p76 = scmp.ne.s32.totalorder %s62, %s63
      %p77 = scmp.eq.s32.totalorder %s29, 1
      %p78 = por %p76, %p77
      %p80 = scmp.ne.s32.totalorder %s63, %s79
      %p81 = scmp.eq.s32.totalorder %s29, 0
      %p82 = por %p80, %p81
      %s83 = ssub.s32 %s23, %s30
      %p84 = scmp.eq.s32.totalorder %s83, 0
      %s86 = sadd.s32 %s85, 1
      %s87 = scalar_select %p84, %s85, %s86
      %p90 = pneg %p84
      %p91 = scmp.eq.s32.totalorder %s23, 1
      %p92 = por %p90, %p91
      %p93 = scmp.ne.s32.totalorder %s85, %s88
      %p94 = scmp.eq.s32.totalorder %s23, 0
      %p95 = por %p93, %p94
      %p96 = scmp.ne.s32.totalorder %s85, %s88
      %p97 = scmp.eq.s32.totalorder %s28, 1
      %p98 = por %p96, %p97
      %p99 = scmp.ne.s32.totalorder %s88, %s89
      %p100 = scmp.eq.s32.totalorder %s28, 0
      %p101 = por %p99, %p100
      %p102 = scmp.ne.s32.totalorder %s88, %s89
      %p103 = scmp.eq.s32.totalorder %s29, 1
      %p104 = por %p102, %p103
      %p106 = scmp.ne.s32.totalorder %s89, %s105
      %p107 = scmp.eq.s32.totalorder %s29, 0
      %p108 = por %p106, %p107
      %s109 = ssub.s32 %s23, %s30
      %p110 = scmp.eq.s32.totalorder %s109, 0
      %s112 = sadd.s32 %s111, 1
      %s113 = scalar_select %p110, %s111, %s112
      %p116 = pneg %p110
      %p117 = scmp.eq.s32.totalorder %s23, 1
      %p118 = por %p116, %p117
      %p119 = scmp.ne.s32.totalorder %s111, %s114
      %p120 = scmp.eq.s32.totalorder %s23, 0
      %p121 = por %p119, %p120
      %p122 = scmp.ne.s32.totalorder %s111, %s114
      %p123 = scmp.eq.s32.totalorder %s28, 1
      %p124 = por %p122, %p123
      %p125 = scmp.ne.s32.totalorder %s114, %s115
      %p126 = scmp.eq.s32.totalorder %s28, 0
      %p127 = por %p125, %p126
      %p128 = scmp.ne.s32.totalorder %s114, %s115
      %p129 = scmp.eq.s32.totalorder %s29, 1
      %p130 = por %p128, %p129
      %p132 = scmp.ne.s32.totalorder %s115, %s131
      %p133 = scmp.eq.s32.totalorder %s29, 0
      %p134 = por %p132, %p133
      %s135 = ssub.s32 %s23, %s30
      %p136 = scmp.eq.s32.totalorder %s135, 0
      %s138 = sadd.s32 %s137, 1
      %s139 = scalar_select %p136, %s137, %s138
      %p142 = pneg %p136
      %p143 = scmp.eq.s32.totalorder %s23, 1
      %p144 = por %p142, %p143
      %p145 = scmp.ne.s32.totalorder %s137, %s140
      %p146 = scmp.eq.s32.totalorder %s23, 0
      %p147 = por %p145, %p146
      %p148 = scmp.ne.s32.totalorder %s137, %s140
      %p149 = scmp.eq.s32.totalorder %s28, 1
      %p150 = por %p148, %p149
      %p151 = scmp.ne.s32.totalorder %s140, %s141
      %p152 = scmp.eq.s32.totalorder %s28, 0
      %p153 = por %p151, %p152
      %p154 = scmp.ne.s32.totalorder %s140, %s141
      %p155 = scmp.eq.s32.totalorder %s29, 1
      %p156 = por %p154, %p155
      %p158 = scmp.ne.s32.totalorder %s141, %s157
      %p159 = scmp.eq.s32.totalorder %s29, 0
      %p160 = por %p158, %p159
      %p161 = scmp.le.s32.totalorder 1, %s23
      %p162 = scmp.lt.s32.totalorder %s23, 3
      %p163 = pnand %p161, %p162
      %p164 = pneg %p163
      // Predicated region
      $region9: #{tpu_custom_call.1} parent=5 // pred_check
        _
      $region10: #{tpu_custom_call.1} parent=5 // pred_check_branch
        %166 = sbr.rel (%p163) target = $region12
      $region11: #{tpu_custom_call.1} parent=5 // pred_region
        %s167 = ssub.s32 %s23, 1
      $region12: #{tpu_custom_call.1} parent=5 // pred_fallthru
        _
      %p168 = scmp.lt.s32.totalorder %s23, 2
      // Predicated region
      $region13: #{tpu_custom_call.1} parent=5 // pred_check
        %p169 = pneg %p168
      $region14: #{tpu_custom_call.1} parent=5 // pred_check_branch
        %171 = sbr.rel (%p169) target = $region16
      $region15: #{tpu_custom_call.1} parent=5 // pred_region
        // Predicated region
        $region17: #{tpu_custom_call.1} parent=15 // pred_check
          %p172 = pneg %p43
        $region18: #{tpu_custom_call.1} parent=15 // pred_check_branch
          %174 = sbr.rel (%p172) target = $region20
        $region19: #{tpu_custom_call.1} parent=15 // pred_region
          %s175 = sand.u32 %s33, 1
          %s176 = scalar_lea.sflag [#allocation3], %s175
          %s177 = sand.u32 %s33, 1
          %s178 = smul.addr %s177, 8
          %s179 = scalar_lea.vmem [#allocation2], %s178
          %s181 = ssub.s32 128, 128
          %182 = vsyncadd %s176, %s181
          %s183 = smul.addr %s23, 128
          %s184 = scalar_lea.hbm %s0, %s183
          %s186 = sshll.u32 %s179, 4
          %s187 = int_to_ptr.vmem [resolvable:$true] %s186
          %189 = dma.hbm_to_vmem [thread:$0]  %s184, 128, %s187, %s176
        $region20: #{tpu_custom_call.1} parent=15 // pred_fallthru
          _
        // Predicated region
        $region21: #{tpu_custom_call.1} parent=15 // pred_check
          %p190 = pneg %p69
        $region22: #{tpu_custom_call.1} parent=15 // pred_check_branch
          %192 = sbr.rel (%p190) target = $region24
        $region23: #{tpu_custom_call.1} parent=15 // pred_region
          %s193 = sand.u32 %s23, 1
          %s194 = scalar_lea.sflag [#allocation6], %s193
          %s195 = sand.u32 %s59, 1
          %s196 = smul.addr %s195, 8
          %s197 = scalar_lea.vmem [#allocation5], %s196
          %s199 = ssub.s32 128, 128
          %200 = vsyncadd %s194, %s199
          %s201 = smul.addr %s23, 128
          %s202 = scalar_lea.hbm %s1, %s201
          %s204 = sshll.u32 %s197, 4
          %s205 = int_to_ptr.vmem [resolvable:$true] %s204
          %207 = dma.hbm_to_vmem [thread:$0]  %s202, 128, %s205, %s194
        $region24: #{tpu_custom_call.1} parent=15 // pred_fallthru
          _
        // Predicated region
        $region25: #{tpu_custom_call.1} parent=15 // pred_check
          %p208 = pneg %p95
        $region26: #{tpu_custom_call.1} parent=15 // pred_check_branch
          %210 = sbr.rel (%p208) target = $region28
        $region27: #{tpu_custom_call.1} parent=15 // pred_region
          %s211 = sand.u32 %s23, 1
          %s212 = scalar_lea.sflag [#allocation6], %s211
          %s213 = sand.u32 %s85, 1
          %s214 = smul.addr %s213, 8
          %s215 = scalar_lea.vmem [#allocation7], %s214
          %s217 = ssub.s32 128, 128
          %218 = vsyncadd %s212, %s217
          %s219 = smul.addr %s23, 128
          %s220 = scalar_lea.hbm %s2, %s219
          %s222 = sshll.u32 %s215, 4
          %s223 = int_to_ptr.vmem [resolvable:$true] %s222
          %225 = dma.hbm_to_vmem [thread:$0]  %s220, 128, %s223, %s212
        $region28: #{tpu_custom_call.1} parent=15 // pred_fallthru
          _
      $region16: #{tpu_custom_call.1} parent=5 // pred_fallthru
        _
      %p226 = scmp.le.s32.totalorder 1, %s23
      %p227 = scmp.lt.s32.totalorder %s23, 3
      %p228 = pnand %p226, %p227
      %p229 = pneg %p228
      // Predicated region
      $region29: #{tpu_custom_call.1} parent=5 // pred_check
        _
      $region30: #{tpu_custom_call.1} parent=5 // pred_check_branch
        %231 = sbr.rel (%p228) target = $region32
      $region31: #{tpu_custom_call.1} parent=5 // pred_region
        %s232 = ssub.s32 %s23, 1
        %s233 = sand.u32 %s36, 1
        %s234 = scalar_lea.sflag [#allocation3], %s233
        %s235 = sand.u32 %s36, 1
        %s236 = smul.addr %s235, 8
        %s237 = scalar_lea.vmem [#allocation2], %s236
        // Predicated region
        $region33: #{tpu_custom_call.1} parent=31 // pred_check
          %p238 = pneg %p49
        $region34: #{tpu_custom_call.1} parent=31 // pred_check_branch
          %240 = sbr.rel (%p238) target = $region36
        $region35: #{tpu_custom_call.1} parent=31 // pred_region
          %241 = dma.done %s234, 128
        $region36: #{tpu_custom_call.1} parent=31 // pred_fallthru
          _
        %s242 = sand.u32 %s28, 1
        %s243 = scalar_lea.sflag [#allocation6], %s242
        %s244 = sand.u32 %s62, 1
        %s245 = smul.addr %s244, 8
        %s246 = scalar_lea.vmem [#allocation5], %s245
        // Predicated region
        $region37: #{tpu_custom_call.1} parent=31 // pred_check
          %p247 = pneg %p75
        $region38: #{tpu_custom_call.1} parent=31 // pred_check_branch
          %249 = sbr.rel (%p247) target = $region40
        $region39: #{tpu_custom_call.1} parent=31 // pred_region
          %250 = dma.done %s243, 128
        $region40: #{tpu_custom_call.1} parent=31 // pred_fallthru
          _
        %s251 = sand.u32 %s28, 1
        %s252 = scalar_lea.sflag [#allocation6], %s251
        %s253 = sand.u32 %s88, 1
        %s254 = smul.addr %s253, 8
        %s255 = scalar_lea.vmem [#allocation7], %s254
        // Predicated region
        $region41: #{tpu_custom_call.1} parent=31 // pred_check
          %p256 = pneg %p101
        $region42: #{tpu_custom_call.1} parent=31 // pred_check_branch
          %258 = sbr.rel (%p256) target = $region44
        $region43: #{tpu_custom_call.1} parent=31 // pred_region
          %259 = dma.done %s252, 128
        $region44: #{tpu_custom_call.1} parent=31 // pred_fallthru
          _
        %s260 = sand.u32 %s36, 1
        %s261 = scalar_lea.sflag [#allocation3], %s260
        %s262 = sand.u32 %s36, 1
        %s263 = smul.addr %s262, 8
        %s264 = scalar_lea.vmem [#allocation2], %s263
        %p265 = pneg %p49
        %p266 = pneg %p46
        %s267 = sand.u32 %s28, 1
        %s268 = scalar_lea.sflag [#allocation6], %s267
        %s269 = sand.u32 %s62, 1
        %s270 = smul.addr %s269, 8
        %s271 = scalar_lea.vmem [#allocation5], %s270
        %p272 = pneg %p75
        %p273 = pneg %p72
        %s274 = sand.u32 %s28, 1
        %s275 = scalar_lea.sflag [#allocation6], %s274
        %s276 = sand.u32 %s88, 1
        %s277 = smul.addr %s276, 8
        %s278 = scalar_lea.vmem [#allocation7], %s277
        %p279 = pneg %p101
        %p280 = pneg %p98
        %p281 = pneg %p127
        %p282 = pneg %p124
        %s283 = sand.u32 %s114, 1
        %s284 = scalar_lea.sflag [#allocation4], %s283
        %s285 = sand.u32 %s114, 1
        %s286 = smul.addr %s285, 8
        %s287 = scalar_lea.vmem [#allocation8], %s286
        %p288 = pneg %p153
        %p289 = pneg %p150
        %s290 = sand.u32 %s140, 1
        %s291 = scalar_lea.sflag [#allocation10], %s290
        %s292 = sand.u32 %s140, 1
        %s293 = smul.addr %s292, 32
        %s294 = scalar_lea.vmem [#allocation9], %s293
        %v295 = vld [vmem:[%s237] sm:$0xff]
        %v296 = vld [vmem:[%s246] sm:$0xff]
        %v297 = vld [vmem:[%s255] sm:$0xff]
        %vm298 = vcmask 64512
        %v300 = vsel %vm298, %v295, 0
        %v303 = vsel %vm298, %v296, 0
        %305 = vmatprep.subr.mxu0 0.0
        %306 = vmatpush1.xpose.msra.mxu0 0.0
        %307 = vmatprep.subr.mxu0 0.0
        %308 = vmatpush1.xpose.msra.mxu0 0.0
        %309 = vmatprep.subr.mxu0 0.0
        %310 = vmatpush1.xpose.msra.mxu0 0.0
        %311 = vmatprep.subr.mxu0 0.0
        %312 = vmatpush1.xpose.msra.mxu0 0.0
        %313 = vmatprep.subr.mxu0 0.0
        %314 = vmatpush1.xpose.msra.mxu0 0.0
        %315 = vmatprep.subr.mxu0 0.0
        %316 = vmatpush1.xpose.msra.mxu0 0.0
        %317 = vmatprep.subr.mxu0 0.0
        %318 = vmatpush1.xpose.msra.mxu0 0.0
        %319 = vmatprep.subr.mxu0 0.0
        %320 = vmatpush1.xpose.msra.mxu0 0.0
        %321 = vmatprep.subr.mxu0 0.0
        %322 = vmatpush1.xpose.msra.mxu0 0.0
        %323 = vmatprep.subr.mxu0 0.0
        %324 = vmatpush1.xpose.msra.mxu0 0.0
        %325 = vmatprep.subr.mxu0 0.0
        %326 = vmatpush1.xpose.msra.mxu0 0.0
        %327 = vmatprep.subr.mxu0 0.0
        %328 = vmatpush1.xpose.msra.mxu0 0.0
        %329 = vmatprep.subr.mxu0 0.0
        %330 = vmatpush1.xpose.msra.mxu0 0.0
        %331 = vmatprep.subr.mxu0 0.0
        %332 = vmatpush1.xpose.msra.mxu0 0.0
        %333 = vmatprep.subr.mxu0 0.0
        %334 = vmatpush1.xpose.msra.mxu0 0.0
        %335 = vmatprep.subr.mxu0 0.0
        %336 = vmatpush1.xpose.msra.mxu0 %v303
        %337 = vmatprep.subr.mxu0 0.0
        %338 = vmatpush2.xpose.msra.mxu0 0.0
        %339 = vmatprep.subr.mxu0 0.0
        %340 = vmatpush2.xpose.msra.mxu0 0.0
        %341 = vmatprep.subr.mxu0 0.0
        %342 = vmatpush2.xpose.msra.mxu0 0.0
        %343 = vmatprep.subr.mxu0 0.0
        %344 = vmatpush2.xpose.msra.mxu0 0.0
        %345 = vmatprep.subr.mxu0 0.0
        %346 = vmatpush2.xpose.msra.mxu0 0.0
        %347 = vmatprep.subr.mxu0 0.0
        %348 = vmatpush2.xpose.msra.mxu0 0.0
        %349 = vmatprep.subr.mxu0 0.0
        %350 = vmatpush2.xpose.msra.mxu0 0.0
        %351 = vmatprep.subr.mxu0 0.0
        %352 = vmatpush2.xpose.msra.mxu0 0.0
        %353 = vmatprep.subr.mxu0 0.0
        %354 = vmatpush2.xpose.msra.mxu0 0.0
        %355 = vmatprep.subr.mxu0 0.0
        %356 = vmatpush2.xpose.msra.mxu0 0.0
        %357 = vmatprep.subr.mxu0 0.0
        %358 = vmatpush2.xpose.msra.mxu0 0.0
        %359 = vmatprep.subr.mxu0 0.0
        %360 = vmatpush2.xpose.msra.mxu0 0.0
        %361 = vmatprep.subr.mxu0 0.0
        %362 = vmatpush2.xpose.msra.mxu0 0.0
        %363 = vmatprep.subr.mxu0 0.0
        %364 = vmatpush2.xpose.msra.mxu0 0.0
        %365 = vmatprep.subr.mxu0 0.0
        %366 = vmatpush2.xpose.msra.mxu0 0.0
        %367 = vmatprep.subr.mxu0 0.0
        %368 = vmatpush2.xpose.msra.mxu0 0.0
        %369 = vmatprep.mubr.f32.mxu0 0.0
        %370 = vmatmul.mubr.f32.gmra.mxu0 %v300
        %v371 = vpop.f32.mrf.mxu0
        %v372 = vadd.f32 0.0, %v371
        %v373 = vpop.f32.mrf.mxu0
        %374 = vdwg.mxu0
        %v375 = vmul.f32 %v372, 0.17677669
        %v376 = vsel %vm298, %v375, -inf
        %377 = vmax.xlane.f32.xlu0 %v376
        %v378 = vpop.xlane.xlu0 %377
        %v379 = vsub.f32 %v375, %v378
        %v380 = vmul.f32 %v379, 1.442695
        %v381 = vpow.pop %v380
        %v382 = vsel %vm298, %v381, 0.0
        %383 = vadd.xlane.f32.xlu0 %v382
        %v384 = vpop.xlane.xlu0 %383
        %v385 = vrcp.pop %v384
        %v386 = vmul.f32 %v381, %v385
        %387 = vst.msk [vmem:[%s294] sm:$0xff] %vm298, %v386
        %v389 = vsel %vm298, %v386, 0
        %391 = vmatprep.subr.mxu0 0.0
        %392 = vmatpush1.msra.mxu0 0.0
        %393 = vmatprep.subr.mxu0 0.0
        %394 = vmatpush1.msra.mxu0 0.0
        %395 = vmatprep.subr.mxu0 0.0
        %396 = vmatpush1.msra.mxu0 0.0
        %397 = vmatprep.subr.mxu0 0.0
        %398 = vmatpush1.msra.mxu0 0.0
        %399 = vmatprep.subr.mxu0 0.0
        %400 = vmatpush1.msra.mxu0 0.0
        %401 = vmatprep.subr.mxu0 0.0
        %402 = vmatpush1.msra.mxu0 0.0
        %403 = vmatprep.subr.mxu0 0.0
        %404 = vmatpush1.msra.mxu0 0.0
        %405 = vmatprep.subr.mxu0 0.0
        %406 = vmatpush1.msra.mxu0 0.0
        %407 = vmatprep.subr.mxu0 0.0
        %408 = vmatpush1.msra.mxu0 0.0
        %409 = vmatprep.subr.mxu0 0.0
        %410 = vmatpush1.msra.mxu0 0.0
        %411 = vmatprep.subr.mxu0 0.0
        %412 = vmatpush1.msra.mxu0 0.0
        %413 = vmatprep.subr.mxu0 0.0
        %414 = vmatpush1.msra.mxu0 0.0
        %415 = vmatprep.subr.mxu0 0.0
        %416 = vmatpush1.msra.mxu0 0.0
        %417 = vmatprep.subr.mxu0 0.0
        %418 = vmatpush1.msra.mxu0 0.0
        %419 = vmatprep.subr.mxu0 0.0
        %420 = vmatpush1.msra.mxu0 0.0
        %421 = vmatprep.subr.mxu0 0.0
        %422 = vmatpush1.msra.mxu0 %v297
        %423 = vmatprep.subr.mxu0 0.0
        %424 = vmatpush2.msra.mxu0 0.0
        %425 = vmatprep.subr.mxu0 0.0
        %426 = vmatpush2.msra.mxu0 0.0
        %427 = vmatprep.subr.mxu0 0.0
        %428 = vmatpush2.msra.mxu0 0.0
        %429 = vmatprep.subr.mxu0 0.0
        %430 = vmatpush2.msra.mxu0 0.0
        %431 = vmatprep.subr.mxu0 0.0
        %432 = vmatpush2.msra.mxu0 0.0
        %433 = vmatprep.subr.mxu0 0.0
        %434 = vmatpush2.msra.mxu0 0.0
        %435 = vmatprep.subr.mxu0 0.0
        %436 = vmatpush2.msra.mxu0 0.0
        %437 = vmatprep.subr.mxu0 0.0
        %438 = vmatpush2.msra.mxu0 0.0
        %439 = vmatprep.subr.mxu0 0.0
        %440 = vmatpush2.msra.mxu0 0.0
        %441 = vmatprep.subr.mxu0 0.0
        %442 = vmatpush2.msra.mxu0 0.0
        %443 = vmatprep.subr.mxu0 0.0
        %444 = vmatpush2.msra.mxu0 0.0
        %445 = vmatprep.subr.mxu0 0.0
        %446 = vmatpush2.msra.mxu0 0.0
        %447 = vmatprep.subr.mxu0 0.0
        %448 = vmatpush2.msra.mxu0 0.0
        %449 = vmatprep.subr.mxu0 0.0
        %450 = vmatpush2.msra.mxu0 0.0
        %451 = vmatprep.subr.mxu0 0.0
        %452 = vmatpush2.msra.mxu0 0.0
        %453 = vmatprep.subr.mxu0 0.0
        %454 = vmatpush2.msra.mxu0 0.0
        %455 = vmatprep.mubr.f32.mxu0 0.0
        %456 = vmatmul.mubr.f32.gmra.mxu0 %v389
        %v457 = vpop.f32.mrf.mxu0
        %v458 = vadd.f32 0.0, %v457
        %v459 = vpop.f32.mrf.mxu0
        %460 = vdwg.mxu0
        %461 = vrot.lane.b32.xlu0 %v295, 120
        %v462 = vpop.permute.xlu0 %461
        %463 = vrot.lane.b32.xlu0 %v296, 120
        %v464 = vpop.permute.xlu0 %463
        %v465 = vsel %vm298, %v462, 0
        %v467 = vsel %vm298, %v464, 0
        %469 = vmatprep.subr.mxu0 0.0
        %470 = vmatpush1.xpose.msra.mxu0 0.0
        %471 = vmatprep.subr.mxu0 0.0
        %472 = vmatpush1.xpose.msra.mxu0 0.0
        %473 = vmatprep.subr.mxu0 0.0
        %474 = vmatpush1.xpose.msra.mxu0 0.0
        %475 = vmatprep.subr.mxu0 0.0
        %476 = vmatpush1.xpose.msra.mxu0 0.0
        %477 = vmatprep.subr.mxu0 0.0
        %478 = vmatpush1.xpose.msra.mxu0 0.0
        %479 = vmatprep.subr.mxu0 0.0
        %480 = vmatpush1.xpose.msra.mxu0 0.0
        %481 = vmatprep.subr.mxu0 0.0
        %482 = vmatpush1.xpose.msra.mxu0 0.0
        %483 = vmatprep.subr.mxu0 0.0
        %484 = vmatpush1.xpose.msra.mxu0 0.0
        %485 = vmatprep.subr.mxu0 0.0
        %486 = vmatpush1.xpose.msra.mxu0 0.0
        %487 = vmatprep.subr.mxu0 0.0
        %488 = vmatpush1.xpose.msra.mxu0 0.0
        %489 = vmatprep.subr.mxu0 0.0
        %490 = vmatpush1.xpose.msra.mxu0 0.0
        %491 = vmatprep.subr.mxu0 0.0
        %492 = vmatpush1.xpose.msra.mxu0 0.0
        %493 = vmatprep.subr.mxu0 0.0
        %494 = vmatpush1.xpose.msra.mxu0 0.0
        %495 = vmatprep.subr.mxu0 0.0
        %496 = vmatpush1.xpose.msra.mxu0 0.0
        %497 = vmatprep.subr.mxu0 0.0
        %498 = vmatpush1.xpose.msra.mxu0 0.0
        %499 = vmatprep.subr.mxu0 0.0
        %500 = vmatpush1.xpose.msra.mxu0 %v467
        %501 = vmatprep.subr.mxu0 0.0
        %502 = vmatpush2.xpose.msra.mxu0 0.0
        %503 = vmatprep.subr.mxu0 0.0
        %504 = vmatpush2.xpose.msra.mxu0 0.0
        %505 = vmatprep.subr.mxu0 0.0
        %506 = vmatpush2.xpose.msra.mxu0 0.0
        %507 = vmatprep.subr.mxu0 0.0
        %508 = vmatpush2.xpose.msra.mxu0 0.0
        %509 = vmatprep.subr.mxu0 0.0
        %510 = vmatpush2.xpose.msra.mxu0 0.0
        %511 = vmatprep.subr.mxu0 0.0
        %512 = vmatpush2.xpose.msra.mxu0 0.0
        %513 = vmatprep.subr.mxu0 0.0
        %514 = vmatpush2.xpose.msra.mxu0 0.0
        %515 = vmatprep.subr.mxu0 0.0
        %516 = vmatpush2.xpose.msra.mxu0 0.0
        %517 = vmatprep.subr.mxu0 0.0
        %518 = vmatpush2.xpose.msra.mxu0 0.0
        %519 = vmatprep.subr.mxu0 0.0
        %520 = vmatpush2.xpose.msra.mxu0 0.0
        %521 = vmatprep.subr.mxu0 0.0
        %522 = vmatpush2.xpose.msra.mxu0 0.0
        %523 = vmatprep.subr.mxu0 0.0
        %524 = vmatpush2.xpose.msra.mxu0 0.0
        %525 = vmatprep.subr.mxu0 0.0
        %526 = vmatpush2.xpose.msra.mxu0 0.0
        %527 = vmatprep.subr.mxu0 0.0
        %528 = vmatpush2.xpose.msra.mxu0 0.0
        %529 = vmatprep.subr.mxu0 0.0
        %530 = vmatpush2.xpose.msra.mxu0 0.0
        %531 = vmatprep.subr.mxu0 0.0
        %532 = vmatpush2.xpose.msra.mxu0 0.0
        %533 = vmatprep.mubr.f32.mxu0 0.0
        %534 = vmatmul.mubr.f32.gmra.mxu0 %v465
        %v535 = vpop.f32.mrf.mxu0
        %v536 = vadd.f32 0.0, %v535
        %v537 = vpop.f32.mrf.mxu0
        %538 = vdwg.mxu0
        %v539 = vmul.f32 %v536, 0.17677669
        %v540 = vsel %vm298, %v539, -inf
        %541 = vmax.xlane.f32.xlu0 %v540
        %v542 = vpop.xlane.xlu0 %541
        %v543 = vsub.f32 %v539, %v542
        %v544 = vmul.f32 %v543, 1.442695
        %v545 = vpow.pop %v544
        %v546 = vsel %vm298, %v545, 0.0
        %547 = vadd.xlane.f32.xlu0 %v546
        %v548 = vpop.xlane.xlu0 %547
        %v549 = vrcp.pop %v548
        %v550 = vmul.f32 %v545, %v549
        %s551 = scalar_lea.vmem %s294, 8 [#allocation9]
        %552 = vst.msk [vmem:[%s551] sm:$0xff] %vm298, %v550
        %554 = vrot.lane.b32.xlu0 %v297, 120
        %v555 = vpop.permute.xlu0 %554
        %v558 = vsel %vm298, %v550, 0
        %560 = vmatprep.subr.mxu0 0.0
        %561 = vmatpush1.msra.mxu0 0.0
        %562 = vmatprep.subr.mxu0 0.0
        %563 = vmatpush1.msra.mxu0 0.0
        %564 = vmatprep.subr.mxu0 0.0
        %565 = vmatpush1.msra.mxu0 0.0
        %566 = vmatprep.subr.mxu0 0.0
        %567 = vmatpush1.msra.mxu0 0.0
        %568 = vmatprep.subr.mxu0 0.0
        %569 = vmatpush1.msra.mxu0 0.0
        %570 = vmatprep.subr.mxu0 0.0
        %571 = vmatpush1.msra.mxu0 0.0
        %572 = vmatprep.subr.mxu0 0.0
        %573 = vmatpush1.msra.mxu0 0.0
        %574 = vmatprep.subr.mxu0 0.0
        %575 = vmatpush1.msra.mxu0 0.0
        %576 = vmatprep.subr.mxu0 0.0
        %577 = vmatpush1.msra.mxu0 0.0
        %578 = vmatprep.subr.mxu0 0.0
        %579 = vmatpush1.msra.mxu0 0.0
        %580 = vmatprep.subr.mxu0 0.0
        %581 = vmatpush1.msra.mxu0 0.0
        %582 = vmatprep.subr.mxu0 0.0
        %583 = vmatpush1.msra.mxu0 0.0
        %584 = vmatprep.subr.mxu0 0.0
        %585 = vmatpush1.msra.mxu0 0.0
        %586 = vmatprep.subr.mxu0 0.0
        %587 = vmatpush1.msra.mxu0 0.0
        %588 = vmatprep.subr.mxu0 0.0
        %589 = vmatpush1.msra.mxu0 0.0
        %590 = vmatprep.subr.mxu0 0.0
        %591 = vmatpush1.msra.mxu0 %v555
        %592 = vmatprep.subr.mxu0 0.0
        %593 = vmatpush2.msra.mxu0 0.0
        %594 = vmatprep.subr.mxu0 0.0
        %595 = vmatpush2.msra.mxu0 0.0
        %596 = vmatprep.subr.mxu0 0.0
        %597 = vmatpush2.msra.mxu0 0.0
        %598 = vmatprep.subr.mxu0 0.0
        %599 = vmatpush2.msra.mxu0 0.0
        %600 = vmatprep.subr.mxu0 0.0
        %601 = vmatpush2.msra.mxu0 0.0
        %602 = vmatprep.subr.mxu0 0.0
        %603 = vmatpush2.msra.mxu0 0.0
        %604 = vmatprep.subr.mxu0 0.0
        %605 = vmatpush2.msra.mxu0 0.0
        %606 = vmatprep.subr.mxu0 0.0
        %607 = vmatpush2.msra.mxu0 0.0
        %608 = vmatprep.subr.mxu0 0.0
        %609 = vmatpush2.msra.mxu0 0.0
        %610 = vmatprep.subr.mxu0 0.0
        %611 = vmatpush2.msra.mxu0 0.0
        %612 = vmatprep.subr.mxu0 0.0
        %613 = vmatpush2.msra.mxu0 0.0
        %614 = vmatprep.subr.mxu0 0.0
        %615 = vmatpush2.msra.mxu0 0.0
        %616 = vmatprep.subr.mxu0 0.0
        %617 = vmatpush2.msra.mxu0 0.0
        %618 = vmatprep.subr.mxu0 0.0
        %619 = vmatpush2.msra.mxu0 0.0
        %620 = vmatprep.subr.mxu0 0.0
        %621 = vmatpush2.msra.mxu0 0.0
        %622 = vmatprep.subr.mxu0 0.0
        %623 = vmatpush2.msra.mxu0 0.0
        %624 = vmatprep.mubr.f32.mxu0 0.0
        %625 = vmatmul.mubr.f32.gmra.mxu0 %v558
        %v626 = vpop.f32.mrf.mxu0
        %v627 = vadd.f32 0.0, %v626
        %v628 = vpop.f32.mrf.mxu0
        %629 = vdwg.mxu0
        %630 = vrot.lane.b32.xlu0 %v295, 112
        %v631 = vpop.permute.xlu0 %630
        %632 = vrot.lane.b32.xlu0 %v296, 112
        %v633 = vpop.permute.xlu0 %632
        %v634 = vsel %vm298, %v631, 0
        %v636 = vsel %vm298, %v633, 0
        %638 = vmatprep.subr.mxu0 0.0
        %639 = vmatpush1.xpose.msra.mxu0 0.0
        %640 = vmatprep.subr.mxu0 0.0
        %641 = vmatpush1.xpose.msra.mxu0 0.0
        %642 = vmatprep.subr.mxu0 0.0
        %643 = vmatpush1.xpose.msra.mxu0 0.0
        %644 = vmatprep.subr.mxu0 0.0
        %645 = vmatpush1.xpose.msra.mxu0 0.0
        %646 = vmatprep.subr.mxu0 0.0
        %647 = vmatpush1.xpose.msra.mxu0 0.0
        %648 = vmatprep.subr.mxu0 0.0
        %649 = vmatpush1.xpose.msra.mxu0 0.0
        %650 = vmatprep.subr.mxu0 0.0
        %651 = vmatpush1.xpose.msra.mxu0 0.0
        %652 = vmatprep.subr.mxu0 0.0
        %653 = vmatpush1.xpose.msra.mxu0 0.0
        %654 = vmatprep.subr.mxu0 0.0
        %655 = vmatpush1.xpose.msra.mxu0 0.0
        %656 = vmatprep.subr.mxu0 0.0
        %657 = vmatpush1.xpose.msra.mxu0 0.0
        %658 = vmatprep.subr.mxu0 0.0
        %659 = vmatpush1.xpose.msra.mxu0 0.0
        %660 = vmatprep.subr.mxu0 0.0
        %661 = vmatpush1.xpose.msra.mxu0 0.0
        %662 = vmatprep.subr.mxu0 0.0
        %663 = vmatpush1.xpose.msra.mxu0 0.0
        %664 = vmatprep.subr.mxu0 0.0
        %665 = vmatpush1.xpose.msra.mxu0 0.0
        %666 = vmatprep.subr.mxu0 0.0
        %667 = vmatpush1.xpose.msra.mxu0 0.0
        %668 = vmatprep.subr.mxu0 0.0
        %669 = vmatpush1.xpose.msra.mxu0 %v636
        %670 = vmatprep.subr.mxu0 0.0
        %671 = vmatpush2.xpose.msra.mxu0 0.0
        %672 = vmatprep.subr.mxu0 0.0
        %673 = vmatpush2.xpose.msra.mxu0 0.0
        %674 = vmatprep.subr.mxu0 0.0
        %675 = vmatpush2.xpose.msra.mxu0 0.0
        %676 = vmatprep.subr.mxu0 0.0
        %677 = vmatpush2.xpose.msra.mxu0 0.0
        %678 = vmatprep.subr.mxu0 0.0
        %679 = vmatpush2.xpose.msra.mxu0 0.0
        %680 = vmatprep.subr.mxu0 0.0
        %681 = vmatpush2.xpose.msra.mxu0 0.0
        %682 = vmatprep.subr.mxu0 0.0
        %683 = vmatpush2.xpose.msra.mxu0 0.0
        %684 = vmatprep.subr.mxu0 0.0
        %685 = vmatpush2.xpose.msra.mxu0 0.0
        %686 = vmatprep.subr.mxu0 0.0
        %687 = vmatpush2.xpose.msra.mxu0 0.0
        %688 = vmatprep.subr.mxu0 0.0
        %689 = vmatpush2.xpose.msra.mxu0 0.0
        %690 = vmatprep.subr.mxu0 0.0
        %691 = vmatpush2.xpose.msra.mxu0 0.0
        %692 = vmatprep.subr.mxu0 0.0
        %693 = vmatpush2.xpose.msra.mxu0 0.0
        %694 = vmatprep.subr.mxu0 0.0
        %695 = vmatpush2.xpose.msra.mxu0 0.0
        %696 = vmatprep.subr.mxu0 0.0
        %697 = vmatpush2.xpose.msra.mxu0 0.0
        %698 = vmatprep.subr.mxu0 0.0
        %699 = vmatpush2.xpose.msra.mxu0 0.0
        %700 = vmatprep.subr.mxu0 0.0
        %701 = vmatpush2.xpose.msra.mxu0 0.0
        %702 = vmatprep.mubr.f32.mxu0 0.0
        %703 = vmatmul.mubr.f32.gmra.mxu0 %v634
        %v704 = vpop.f32.mrf.mxu0
        %v705 = vadd.f32 0.0, %v704
        %v706 = vpop.f32.mrf.mxu0
        %707 = vdwg.mxu0
        %v708 = vmul.f32 %v705, 0.17677669
        %v709 = vsel %vm298, %v708, -inf
        %710 = vmax.xlane.f32.xlu0 %v709
        %v711 = vpop.xlane.xlu0 %710
        %v712 = vsub.f32 %v708, %v711
        %v713 = vmul.f32 %v712, 1.442695
        %v714 = vpow.pop %v713
        %v715 = vsel %vm298, %v714, 0.0
        %716 = vadd.xlane.f32.xlu0 %v715
        %v717 = vpop.xlane.xlu0 %716
        %v718 = vrcp.pop %v717
        %v719 = vmul.f32 %v714, %v718
        %s720 = scalar_lea.vmem %s294, 16 [#allocation9]
        %721 = vst.msk [vmem:[%s720] sm:$0xff] %vm298, %v719
        %722 = vrot.lane.b32.xlu0 %v297, 112
        %v723 = vpop.permute.xlu0 %722
        %v726 = vsel %vm298, %v719, 0
        %728 = vmatprep.subr.mxu0 0.0
        %729 = vmatpush1.msra.mxu0 0.0
        %730 = vmatprep.subr.mxu0 0.0
        %731 = vmatpush1.msra.mxu0 0.0
        %732 = vmatprep.subr.mxu0 0.0
        %733 = vmatpush1.msra.mxu0 0.0
        %734 = vmatprep.subr.mxu0 0.0
        %735 = vmatpush1.msra.mxu0 0.0
        %736 = vmatprep.subr.mxu0 0.0
        %737 = vmatpush1.msra.mxu0 0.0
        %738 = vmatprep.subr.mxu0 0.0
        %739 = vmatpush1.msra.mxu0 0.0
        %740 = vmatprep.subr.mxu0 0.0
        %741 = vmatpush1.msra.mxu0 0.0
        %742 = vmatprep.subr.mxu0 0.0
        %743 = vmatpush1.msra.mxu0 0.0
        %744 = vmatprep.subr.mxu0 0.0
        %745 = vmatpush1.msra.mxu0 0.0
        %746 = vmatprep.subr.mxu0 0.0
        %747 = vmatpush1.msra.mxu0 0.0
        %748 = vmatprep.subr.mxu0 0.0
        %749 = vmatpush1.msra.mxu0 0.0
        %750 = vmatprep.subr.mxu0 0.0
        %751 = vmatpush1.msra.mxu0 0.0
        %752 = vmatprep.subr.mxu0 0.0
        %753 = vmatpush1.msra.mxu0 0.0
        %754 = vmatprep.subr.mxu0 0.0
        %755 = vmatpush1.msra.mxu0 0.0
        %756 = vmatprep.subr.mxu0 0.0
        %757 = vmatpush1.msra.mxu0 0.0
        %758 = vmatprep.subr.mxu0 0.0
        %759 = vmatpush1.msra.mxu0 %v723
        %760 = vmatprep.subr.mxu0 0.0
        %761 = vmatpush2.msra.mxu0 0.0
        %762 = vmatprep.subr.mxu0 0.0
        %763 = vmatpush2.msra.mxu0 0.0
        %764 = vmatprep.subr.mxu0 0.0
        %765 = vmatpush2.msra.mxu0 0.0
        %766 = vmatprep.subr.mxu0 0.0
        %767 = vmatpush2.msra.mxu0 0.0
        %768 = vmatprep.subr.mxu0 0.0
        %769 = vmatpush2.msra.mxu0 0.0
        %770 = vmatprep.subr.mxu0 0.0
        %771 = vmatpush2.msra.mxu0 0.0
        %772 = vmatprep.subr.mxu0 0.0
        %773 = vmatpush2.msra.mxu0 0.0
        %774 = vmatprep.subr.mxu0 0.0
        %775 = vmatpush2.msra.mxu0 0.0
        %776 = vmatprep.subr.mxu0 0.0
        %777 = vmatpush2.msra.mxu0 0.0
        %778 = vmatprep.subr.mxu0 0.0
        %779 = vmatpush2.msra.mxu0 0.0
        %780 = vmatprep.subr.mxu0 0.0
        %781 = vmatpush2.msra.mxu0 0.0
        %782 = vmatprep.subr.mxu0 0.0
        %783 = vmatpush2.msra.mxu0 0.0
        %784 = vmatprep.subr.mxu0 0.0
        %785 = vmatpush2.msra.mxu0 0.0
        %786 = vmatprep.subr.mxu0 0.0
        %787 = vmatpush2.msra.mxu0 0.0
        %788 = vmatprep.subr.mxu0 0.0
        %789 = vmatpush2.msra.mxu0 0.0
        %790 = vmatprep.subr.mxu0 0.0
        %791 = vmatpush2.msra.mxu0 0.0
        %792 = vmatprep.mubr.f32.mxu0 0.0
        %793 = vmatmul.mubr.f32.gmra.mxu0 %v726
        %v794 = vpop.f32.mrf.mxu0
        %v795 = vadd.f32 0.0, %v794
        %v796 = vpop.f32.mrf.mxu0
        %797 = vdwg.mxu0
        %798 = vrot.lane.b32.xlu0 %v295, 104
        %v799 = vpop.permute.xlu0 %798
        %800 = vrot.lane.b32.xlu0 %v296, 104
        %v801 = vpop.permute.xlu0 %800
        %v802 = vsel %vm298, %v799, 0
        %v804 = vsel %vm298, %v801, 0
        %806 = vmatprep.subr.mxu0 0.0
        %807 = vmatpush1.xpose.msra.mxu0 0.0
        %808 = vmatprep.subr.mxu0 0.0
        %809 = vmatpush1.xpose.msra.mxu0 0.0
        %810 = vmatprep.subr.mxu0 0.0
        %811 = vmatpush1.xpose.msra.mxu0 0.0
        %812 = vmatprep.subr.mxu0 0.0
        %813 = vmatpush1.xpose.msra.mxu0 0.0
        %814 = vmatprep.subr.mxu0 0.0
        %815 = vmatpush1.xpose.msra.mxu0 0.0
        %816 = vmatprep.subr.mxu0 0.0
        %817 = vmatpush1.xpose.msra.mxu0 0.0
        %818 = vmatprep.subr.mxu0 0.0
        %819 = vmatpush1.xpose.msra.mxu0 0.0
        %820 = vmatprep.subr.mxu0 0.0
        %821 = vmatpush1.xpose.msra.mxu0 0.0
        %822 = vmatprep.subr.mxu0 0.0
        %823 = vmatpush1.xpose.msra.mxu0 0.0
        %824 = vmatprep.subr.mxu0 0.0
        %825 = vmatpush1.xpose.msra.mxu0 0.0
        %826 = vmatprep.subr.mxu0 0.0
        %827 = vmatpush1.xpose.msra.mxu0 0.0
        %828 = vmatprep.subr.mxu0 0.0
        %829 = vmatpush1.xpose.msra.mxu0 0.0
        %830 = vmatprep.subr.mxu0 0.0
        %831 = vmatpush1.xpose.msra.mxu0 0.0
        %832 = vmatprep.subr.mxu0 0.0
        %833 = vmatpush1.xpose.msra.mxu0 0.0
        %834 = vmatprep.subr.mxu0 0.0
        %835 = vmatpush1.xpose.msra.mxu0 0.0
        %836 = vmatprep.subr.mxu0 0.0
        %837 = vmatpush1.xpose.msra.mxu0 %v804
        %838 = vmatprep.subr.mxu0 0.0
        %839 = vmatpush2.xpose.msra.mxu0 0.0
        %840 = vmatprep.subr.mxu0 0.0
        %841 = vmatpush2.xpose.msra.mxu0 0.0
        %842 = vmatprep.subr.mxu0 0.0
        %843 = vmatpush2.xpose.msra.mxu0 0.0
        %844 = vmatprep.subr.mxu0 0.0
        %845 = vmatpush2.xpose.msra.mxu0 0.0
        %846 = vmatprep.subr.mxu0 0.0
        %847 = vmatpush2.xpose.msra.mxu0 0.0
        %848 = vmatprep.subr.mxu0 0.0
        %849 = vmatpush2.xpose.msra.mxu0 0.0
        %850 = vmatprep.subr.mxu0 0.0
        %851 = vmatpush2.xpose.msra.mxu0 0.0
        %852 = vmatprep.subr.mxu0 0.0
        %853 = vmatpush2.xpose.msra.mxu0 0.0
        %854 = vmatprep.subr.mxu0 0.0
        %855 = vmatpush2.xpose.msra.mxu0 0.0
        %856 = vmatprep.subr.mxu0 0.0
        %857 = vmatpush2.xpose.msra.mxu0 0.0
        %858 = vmatprep.subr.mxu0 0.0
        %859 = vmatpush2.xpose.msra.mxu0 0.0
        %860 = vmatprep.subr.mxu0 0.0
        %861 = vmatpush2.xpose.msra.mxu0 0.0
        %862 = vmatprep.subr.mxu0 0.0
        %863 = vmatpush2.xpose.msra.mxu0 0.0
        %864 = vmatprep.subr.mxu0 0.0
        %865 = vmatpush2.xpose.msra.mxu0 0.0
        %866 = vmatprep.subr.mxu0 0.0
        %867 = vmatpush2.xpose.msra.mxu0 0.0
        %868 = vmatprep.subr.mxu0 0.0
        %869 = vmatpush2.xpose.msra.mxu0 0.0
        %870 = vmatprep.mubr.f32.mxu0 0.0
        %871 = vmatmul.mubr.f32.gmra.mxu0 %v802
        %v872 = vpop.f32.mrf.mxu0
        %v873 = vadd.f32 0.0, %v872
        %v874 = vpop.f32.mrf.mxu0
        %875 = vdwg.mxu0
        %v876 = vmul.f32 %v873, 0.17677669
        %v877 = vsel %vm298, %v876, -inf
        %878 = vmax.xlane.f32.xlu0 %v877
        %v879 = vpop.xlane.xlu0 %878
        %v880 = vsub.f32 %v876, %v879
        %v881 = vmul.f32 %v880, 1.442695
        %v882 = vpow.pop %v881
        %v883 = vsel %vm298, %v882, 0.0
        %884 = vadd.xlane.f32.xlu0 %v883
        %v885 = vpop.xlane.xlu0 %884
        %v886 = vrcp.pop %v885
        %v887 = vmul.f32 %v882, %v886
        %s888 = scalar_lea.vmem %s294, 24 [#allocation9]
        %889 = vst.msk [vmem:[%s888] sm:$0xff] %vm298, %v887
        %890 = vrot.lane.b32.xlu0 %v297, 104
        %v891 = vpop.permute.xlu0 %890
        %v894 = vsel %vm298, %v887, 0
        %896 = vmatprep.subr.mxu0 0.0
        %897 = vmatpush1.msra.mxu0 0.0
        %898 = vmatprep.subr.mxu0 0.0
        %899 = vmatpush1.msra.mxu0 0.0
        %900 = vmatprep.subr.mxu0 0.0
        %901 = vmatpush1.msra.mxu0 0.0
        %902 = vmatprep.subr.mxu0 0.0
        %903 = vmatpush1.msra.mxu0 0.0
        %904 = vmatprep.subr.mxu0 0.0
        %905 = vmatpush1.msra.mxu0 0.0
        %906 = vmatprep.subr.mxu0 0.0
        %907 = vmatpush1.msra.mxu0 0.0
        %908 = vmatprep.subr.mxu0 0.0
        %909 = vmatpush1.msra.mxu0 0.0
        %910 = vmatprep.subr.mxu0 0.0
        %911 = vmatpush1.msra.mxu0 0.0
        %912 = vmatprep.subr.mxu0 0.0
        %913 = vmatpush1.msra.mxu0 0.0
        %914 = vmatprep.subr.mxu0 0.0
        %915 = vmatpush1.msra.mxu0 0.0
        %916 = vmatprep.subr.mxu0 0.0
        %917 = vmatpush1.msra.mxu0 0.0
        %918 = vmatprep.subr.mxu0 0.0
        %919 = vmatpush1.msra.mxu0 0.0
        %920 = vmatprep.subr.mxu0 0.0
        %921 = vmatpush1.msra.mxu0 0.0
        %922 = vmatprep.subr.mxu0 0.0
        %923 = vmatpush1.msra.mxu0 0.0
        %924 = vmatprep.subr.mxu0 0.0
        %925 = vmatpush1.msra.mxu0 0.0
        %926 = vmatprep.subr.mxu0 0.0
        %927 = vmatpush1.msra.mxu0 %v891
        %928 = vmatprep.subr.mxu0 0.0
        %929 = vmatpush2.msra.mxu0 0.0
        %930 = vmatprep.subr.mxu0 0.0
        %931 = vmatpush2.msra.mxu0 0.0
        %932 = vmatprep.subr.mxu0 0.0
        %933 = vmatpush2.msra.mxu0 0.0
        %934 = vmatprep.subr.mxu0 0.0
        %935 = vmatpush2.msra.mxu0 0.0
        %936 = vmatprep.subr.mxu0 0.0
        %937 = vmatpush2.msra.mxu0 0.0
        %938 = vmatprep.subr.mxu0 0.0
        %939 = vmatpush2.msra.mxu0 0.0
        %940 = vmatprep.subr.mxu0 0.0
        %941 = vmatpush2.msra.mxu0 0.0
        %942 = vmatprep.subr.mxu0 0.0
        %943 = vmatpush2.msra.mxu0 0.0
        %944 = vmatprep.subr.mxu0 0.0
        %945 = vmatpush2.msra.mxu0 0.0
        %946 = vmatprep.subr.mxu0 0.0
        %947 = vmatpush2.msra.mxu0 0.0
        %948 = vmatprep.subr.mxu0 0.0
        %949 = vmatpush2.msra.mxu0 0.0
        %950 = vmatprep.subr.mxu0 0.0
        %951 = vmatpush2.msra.mxu0 0.0
        %952 = vmatprep.subr.mxu0 0.0
        %953 = vmatpush2.msra.mxu0 0.0
        %954 = vmatprep.subr.mxu0 0.0
        %955 = vmatpush2.msra.mxu0 0.0
        %956 = vmatprep.subr.mxu0 0.0
        %957 = vmatpush2.msra.mxu0 0.0
        %958 = vmatprep.subr.mxu0 0.0
        %959 = vmatpush2.msra.mxu0 0.0
        %960 = vmatprep.mubr.f32.mxu0 0.0
        %961 = vmatmul.mubr.f32.gmra.mxu0 %v894
        %v962 = vpop.f32.mrf.mxu0
        %v963 = vadd.f32 0.0, %v962
        %v964 = vpop.f32.mrf.mxu0
        %965 = vdwg.mxu0
        %967 = vrot.lane.b32.xlu0 %v627, 8
        %v968 = vpop.permute.xlu0 %967
        %971 = vrot.lane.b32.xlu0 %v795, 16
        %v972 = vpop.permute.xlu0 %971
        %975 = vrot.lane.b32.xlu0 %v963, 24
        %v976 = vpop.permute.xlu0 %975
        %v978 = vsel %vm298, %v458, %v968
        %vm979 = vcmask 130048
        %v980 = vsel %vm979, %v978, %v972
        %vm981 = vcmask 195584
        %v982 = vsel %vm981, %v980, %v976
        %vm983 = vcmask 261120
        %984 = vst.msk [vmem:[%s287] sm:$0xff] %vm983, %v982
        %s985 = sand.u32 %s114, 1
        %s986 = scalar_lea.sflag [#allocation4], %s985
        %s987 = sand.u32 %s114, 1
        %s988 = smul.addr %s987, 8
        %s989 = scalar_lea.vmem [#allocation8], %s988
        %s990 = sand.u32 %s140, 1
        %s991 = scalar_lea.sflag [#allocation10], %s990
        %s992 = sand.u32 %s140, 1
        %s993 = smul.addr %s992, 32
        %s994 = scalar_lea.vmem [#allocation9], %s993
        // Predicated region
        $region45: #{tpu_custom_call.1} parent=31 // pred_check
          %p995 = pneg %p124
        $region46: #{tpu_custom_call.1} parent=31 // pred_check_branch
          %997 = sbr.rel (%p995) target = $region48
        $region47: #{tpu_custom_call.1} parent=31 // pred_region
          %s999 = ssub.s32 128, 128
          %1000 = vsyncadd %s986, %s999
          %s1001 = smul.addr %s28, 128
          %s1002 = scalar_lea.hbm %s3, %s1001
          %s1004 = sshll.u32 %s989, 4
          %s1005 = int_to_ptr.vmem [resolvable:$true] %s1004
          %1007 = dma.vmem_to_hbm [thread:$0]  %s1005, 128, %s1002, %s986
        $region48: #{tpu_custom_call.1} parent=31 // pred_fallthru
          _
        // Predicated region
        $region49: #{tpu_custom_call.1} parent=31 // pred_check
          %p1008 = pneg %p150
        $region50: #{tpu_custom_call.1} parent=31 // pred_check_branch
          %1010 = sbr.rel (%p1008) target = $region52
        $region51: #{tpu_custom_call.1} parent=31 // pred_region
          %s1012 = ssub.s32 512, 512
          %1013 = vsyncadd %s991, %s1012
          %s1014 = smul.addr %s28, 4
          %s1015 = smul.addr %s1014, 128
          %s1016 = scalar_lea.hbm %s4, %s1015
          %s1017 = sshll.u32 %s994, 4
          %s1018 = int_to_ptr.vmem [resolvable:$true] %s1017
          %1023 = dma.vmem_to_hbm [thread:$0]  %s1018, 512, %s1016, %s991, 128, 128, 8
        $region52: #{tpu_custom_call.1} parent=31 // pred_fallthru
          _
      $region32: #{tpu_custom_call.1} parent=5 // pred_fallthru
        _
      %p1024 = scmp.le.s32.totalorder 2, %s23
      // Predicated region
      $region53: #{tpu_custom_call.1} parent=5 // pred_check
        %p1025 = pneg %p1024
      $region54: #{tpu_custom_call.1} parent=5 // pred_check_branch
        %1027 = sbr.rel (%p1025) target = $region56
      $region55: #{tpu_custom_call.1} parent=5 // pred_region
        %s1028 = ssub.s32 %s23, 2
        // Predicated region
        $region57: #{tpu_custom_call.1} parent=55 // pred_check
          %p1029 = pneg %p130
        $region58: #{tpu_custom_call.1} parent=55 // pred_check_branch
          %1031 = sbr.rel (%p1029) target = $region60
        $region59: #{tpu_custom_call.1} parent=55 // pred_region
          %s1032 = sand.u32 %s115, 1
          %s1033 = scalar_lea.sflag [#allocation4], %s1032
          %s1034 = sand.u32 %s115, 1
          %s1035 = smul.addr %s1034, 8
          %s1036 = scalar_lea.vmem [#allocation8], %s1035
          %1037 = dma.done %s1033, 128
        $region60: #{tpu_custom_call.1} parent=55 // pred_fallthru
          _
        // Predicated region
        $region61: #{tpu_custom_call.1} parent=55 // pred_check
          %p1038 = pneg %p156
        $region62: #{tpu_custom_call.1} parent=55 // pred_check_branch
          %1040 = sbr.rel (%p1038) target = $region64
        $region63: #{tpu_custom_call.1} parent=55 // pred_region
          %s1041 = sand.u32 %s141, 1
          %s1042 = scalar_lea.sflag [#allocation10], %s1041
          %s1043 = sand.u32 %s141, 1
          %s1044 = smul.addr %s1043, 32
          %s1045 = scalar_lea.vmem [#allocation9], %s1044
          %1046 = dma.done %s1042, 512
        $region64: #{tpu_custom_call.1} parent=55 // pred_fallthru
          _
      $region56: #{tpu_custom_call.1} parent=5 // pred_fallthru
        _
    $region6: #{tpu_custom_call.1} parent=1 // loop_footer
      %s27 = sadd.s32 1, %s23
    $region7: #{tpu_custom_call.1} parent=1 // loop_footer_branch
      %22 = sbr.rel target = $region3
    $region8: #{tpu_custom_call.1} parent=1 // loop_exit
      _
    %1047 = vsyncpa [#allocation3], 1
    %s1048 = scalar_lea.sflag [#allocation3], 1
    %1049 = vsyncpa %s1048, 1
    %1050 = vsyncpa [#allocation6], 1
    %s1051 = scalar_lea.sflag [#allocation6], 1
    %1052 = vsyncpa %s1051, 1
    %1053 = vsyncpa [#allocation4], 1
    %s1054 = scalar_lea.sflag [#allocation4], 1
    %1055 = vsyncpa %s1054, 1
    %1056 = vsyncpa [#allocation10], 1
    %s1057 = scalar_lea.sflag [#allocation10], 1
    %1058 = vsyncpa %s1057, 1

</llo_original>
